<compile_context>
chip_gen: v5e
topology: v5e:2x2
jax: 0.10.0
libtpu: 0.0.40
codegen_flags: <defaults>
</compile_context>

<pallas_src>
import functools

import jax
import jax.numpy as jnp
from jax.experimental import pallas as pl
from jax.experimental.pallas import tpu as pltpu

_EPS = 1e-12                        # default eps of torch.nn.functional.normalize
_LANE_CHOICES = (512, 256, 128)     # lane width of the flattened heatmap slab
_TARGET_BLOCK_BYTES = 2 * 1024 * 1024   # ~2 MiB per input per grid step
_VMEM_LIMIT_BYTES = 32 * 1024 * 1024    # explicit scoped-VMEM budget (safe on v5e/v6e/v7x)


# --------------------------------------------------------------------------
# geometric loss (shared helper, runs on (B, 14) f32 points, returns (1, 1))
# --------------------------------------------------------------------------
def _geo_loss_11(p, include_geo, gamma_horz, gamma_vert, batch):
    if not include_geo:
        # TODO(synk): PyTorch returns torch.tensor(0) (int64); we return f32 0.
        return jnp.zeros((1, 1), jnp.float32)

    inv_b = 1.0 / batch

    def kp(k):                                   # keypoint k -> (B, 2)
        return p[:, 2 * k:2 * k + 2]

    def nrm(a):                                  # F.normalize(a, dim=1)
        # a / max(||a||, eps)  ==  a * rsqrt(max(||a||^2, eps^2))   (EUP rsqrt)
        sq = jnp.sum(a * a, axis=1, keepdims=True)
        return a * jax.lax.rsqrt(jnp.maximum(sq, _EPS * _EPS))

    v53 = nrm(kp(5) - kp(3)); v31 = nrm(kp(3) - kp(1))
    v10 = nrm(kp(1) - kp(0)); v64 = nrm(kp(6) - kp(4))
    v42 = nrm(kp(4) - kp(2)); v20 = nrm(kp(2) - kp(0))
    h21 = nrm(kp(2) - kp(1)); h43 = nrm(kp(4) - kp(3))
    h65 = nrm(kp(6) - kp(5))

    def mean_outer_dot(x, y):
        # mean over (B, B) of x[b] . y[b'] == (sum_b x) . (sum_b y) / B^2
        sx = jnp.sum(x, axis=0, keepdims=True)               # (1, 2)
        sy = jnp.sum(y, axis=0, keepdims=True)               # (1, 2)
        return jnp.sum(sx * sy, axis=1, keepdims=True) * (inv_b * inv_b)

    vert_mean = 4.0 - (mean_outer_dot(v31, v53) + mean_outer_dot(v10, v31)
                       + mean_outer_dot(v64, v42) + mean_outer_dot(v42, v20))
    horz_mean = 2.0 - (mean_outer_dot(h43, h21) + mean_outer_dot(h65, h43))

    return (gamma_horz * horz_mean / 2.0
            + gamma_vert * vert_mean / 4.0).astype(jnp.float32)


def _pack_out(loc_11, geo_11):
    # Merge two (1,1) scalars into a (1,2) slab without a concat.
    sel = jax.lax.broadcasted_iota(jnp.int32, (1, 2), 1)
    return jnp.where(sel == 0, loc_11, geo_11).astype(jnp.float32)


# --------------------------------------------------------------------------
# kernel 1: softargmax / l1 path (points only, no heatmap DMA)
# --------------------------------------------------------------------------
def _points_loss_kernel(pts_ref, tpts_ref, out_ref, *,
                        loss_type, include_geo, gamma_horz, gamma_vert, batch):
    inv_b = 1.0 / batch
    p = pts_ref[...].astype(jnp.float32)                      # (B, 14)
    d = p - tpts_ref[...].astype(jnp.float32)
    if loss_type in ("l1_softargmax", "l1_sm"):
        loc = jnp.sum(jnp.abs(d), axis=(0, 1), keepdims=True) * inv_b
    else:  # l2_softargmax / l2_sm
        loc = jnp.sum(d * d, axis=(0, 1), keepdims=True) * inv_b
    geo = _geo_loss_11(p, include_geo, gamma_horz, gamma_vert, batch)
    out_ref[...] = _pack_out(loc, geo)


# --------------------------------------------------------------------------
# kernel 2: l2_heatmap path (large-tile streaming reduction, 2-core sharded)
# --------------------------------------------------------------------------
def _heatmap_loss_kernel(pts_ref, hm_ref, thm_ref, out_ref, acc_ref, *,
                         block_rows, lanes, total_rows, tiles_per_core,
                         include_geo, gamma_horz, gamma_vert, batch, need_mask):
    c = pl.program_id(0)          # core / shard axis ("parallel")
    j = pl.program_id(1)          # streaming reduction axis ("arbitrary")

    @pl.when(j == 0)
    def _():
        acc_ref[...] = jnp.zeros_like(acc_ref)

    def accumulate(masked):
        d = hm_ref[...].astype(jnp.float32) - thm_ref[...].astype(jnp.float32)
        if masked:
            tile = c * tiles_per_core + j            # logical (unclamped) tile
            row = (jax.lax.broadcasted_iota(jnp.int32, d.shape, 0)
                   + tile * block_rows)
            d = jnp.where(row < total_rows, d, 0.0)
        d2 = d * d
        # Row-axis partial reduce only (mostly cross-vreg VPU adds); the
        # cross-lane reduce to a scalar happens once in the epilogue.
        acc_ref[...] += jnp.sum(d2, axis=0, keepdims=True)    # (1, lanes)

    if need_mask:
        tile = c * tiles_per_core + j
        tile_end = (tile + 1) * block_rows

        @pl.when(tile_end <= total_rows)      # fully in-bounds tile: no masking
        def _():
            accumulate(False)

        @pl.when(tile_end > total_rows)       # ragged / fully-OOB tile
        def _():
            accumulate(True)
    else:
        accumulate(False)

    @pl.when(j == tiles_per_core - 1)
    def _():
        loc = jnp.sum(acc_ref[...], keepdims=True) * (1.0 / batch)   # (1, 1)
        geo = _geo_loss_11(pts_ref[...].astype(jnp.float32),
                           include_geo, gamma_horz, gamma_vert, batch)
        out_ref[...] = _pack_out(loc, geo)


# --------------------------------------------------------------------------
# wrapper
# --------------------------------------------------------------------------
def cross_ratio_loss(heatmap, points, target_hm, target_points, *,
                     loss_type="l2_softargmax", include_geo=True,
                     geo_loss_gamma_horz=0.05, geo_loss_gamma_vert=0.05):
    B, K, two = points.shape
    assert two == 2 and K == 7
    pts2 = points.reshape(B, K * 2).astype(jnp.float32)

    if loss_type in ("l2_heatmap", "l2_hm"):
        total = 1
        for s in heatmap.shape:
            total *= int(s)

        # Pick a lane width (multiple of 128) that divides the element count so
        # the reshape is free; otherwise zero-pad both heatmaps (pad^2 adds 0).
        lanes = None
        for cand in _LANE_CHOICES:
            if total % cand == 0:
                lanes = cand
                break
        hm_flat = heatmap.reshape(-1)
        thm_flat = target_hm.reshape(-1)
        if lanes is None:
            lanes = 128
            pad = (-total) % lanes
            # NOTE: this pad is an extra HBM copy; only hit when the element
            # count is not a multiple of 128 (rare for heatmaps).
            hm_flat = jnp.pad(hm_flat, (0, pad))
            thm_flat = jnp.pad(thm_flat, (0, pad))
        hm2 = hm_flat.reshape(-1, lanes)      # native dtype kept through DMA
        thm2 = thm_flat.reshape(-1, lanes)
        rows = hm2.shape[0]

        itemsize = jnp.dtype(hm2.dtype).itemsize
        # ~2 MiB per input per step, multiple of 8 rows, never larger than the array.
        target_rows = max(8, (_TARGET_BLOCK_BYTES // (lanes * itemsize)) // 8 * 8)
        if rows >= 8:
            block_rows = min(target_rows, (rows // 8) * 8)
        else:
            block_rows = rows                 # single full-array block
        n_tiles = pl.cdiv(rows, block_rows)

        # Shard the stream across 2 TensorCores (v7x); sequential elsewhere.
        ncores = 2 if n_tiles >= 2 else 1
        tiles_per_core = pl.cdiv(n_tiles, ncores)
        coverage_rows = ncores * tiles_per_core * block_rows
        need_mask = coverage_rows > rows

        def hm_index_map(c, j):
            # Clamp so any logically-OOB tile re-reads the last valid block
            # (its contribution is masked to zero inside the kernel).
            return (jnp.minimum(c * tiles_per_core + j, n_tiles - 1), 0)

        kernel = functools.partial(
            _heatmap_loss_kernel,
            block_rows=block_rows, lanes=lanes, total_rows=rows,
            tiles_per_core=tiles_per_core,
            include_geo=include_geo,
            gamma_horz=float(geo_loss_gamma_horz),
            gamma_vert=float(geo_loss_gamma_vert),
            batch=B, need_mask=need_mask)

        cost = pl.CostEstimate(
            flops=3 * rows * lanes, transcendentals=0,
            bytes_accessed=2 * rows * lanes * itemsize + pts2.size * 4 + 16)

        out = pl.pallas_call(
            kernel,
            grid=(ncores, tiles_per_core),
            in_specs=[pl.BlockSpec((B, K * 2), lambda c, j: (0, 0)),   # points (resident)
                      pl.BlockSpec((block_rows, lanes), hm_index_map),  # heatmap tile
                      pl.BlockSpec((block_rows, lanes), hm_index_map)], # target tile
            out_specs=pl.BlockSpec((1, 2), lambda c, j: (c, 0)),
            out_shape=jax.ShapeDtypeStruct((ncores, 2), jnp.float32),
            scratch_shapes=[pltpu.VMEM((1, lanes), jnp.float32)],
            compiler_params=pltpu.CompilerParams(
                dimension_semantics=("parallel", "arbitrary"),
                vmem_limit_bytes=_VMEM_LIMIT_BYTES),
            cost_estimate=cost,
        )(pts2, hm2, thm2)

        location_loss = jnp.sum(out[:, 0])    # sum of per-core partials
        geo_loss = out[0, 1]

    elif loss_type in ("l2_softargmax", "l2_sm", "l1_softargmax", "l1_sm"):
        # Heatmaps are never passed to pallas_call on this path -> no HBM DMA.
        tpts2 = target_points.reshape(B, K * 2).astype(jnp.float32)
        kernel = functools.partial(
            _points_loss_kernel,
            loss_type=loss_type, include_geo=include_geo,
            gamma_horz=float(geo_loss_gamma_horz),
            gamma_vert=float(geo_loss_gamma_vert),
            batch=B)

        out = pl.pallas_call(
            kernel,
            grid=(1,),
            in_specs=[pl.BlockSpec((B, K * 2), lambda i: (0, 0)),
                      pl.BlockSpec((B, K * 2), lambda i: (0, 0))],
            out_specs=pl.BlockSpec((1, 2), lambda i: (0, 0)),
            out_shape=jax.ShapeDtypeStruct((1, 2), jnp.float32),
            compiler_params=pltpu.CompilerParams(
                dimension_semantics=("arbitrary",)),
        )(pts2, tpts2)

        location_loss = out[0, 0]
        geo_loss = out[0, 1]
    else:
        raise ValueError(f"unsupported loss_type: {loss_type}")

    return location_loss, geo_loss, location_loss + geo_loss


# -------- pure-JAX reference mirroring the PyTorch forward exactly --------
def _reference(heatmap, points, target_hm, target_points,
               loss_type, include_geo, gh, gv):
    if loss_type in ("l2_softargmax", "l2_sm"):
        loc = ((points - target_points) ** 2).sum(2).sum(1).mean()
    elif loss_type in ("l2_heatmap", "l2_hm"):
        loc = ((heatmap.astype(jnp.float32) - target_hm.astype(jnp.float32)) ** 2
               ).sum(3).sum(2).sum(1).mean()
    else:
        loc = jnp.abs(points - target_points).sum(2).sum(1).mean()
    if include_geo:
        def nrm(a):
            n = jnp.sqrt((a * a).sum(1, keepdims=True))
            return a / jnp.maximum(n, _EPS)
        p = points
        v53 = nrm(p[:, 5] - p[:, 3]); v31 = nrm(p[:, 3] - p[:, 1])
        vA = 1.0 - v31 @ v53.T
        v10 = nrm(p[:, 1] - p[:, 0]); vB = 1.0 - v10 @ v31.T
        v64 = nrm(p[:, 6] - p[:, 4]); v42 = nrm(p[:, 4] - p[:, 2])
        vC = 1.0 - v64 @ v42.T
        v20 = nrm(p[:, 2] - p[:, 0]); vD = 1.0 - v42 @ v20.T
        h21 = nrm(p[:, 2] - p[:, 1]); h43 = nrm(p[:, 4] - p[:, 3])
        hA = 1.0 - h43 @ h21.T
        h65 = nrm(p[:, 6] - p[:, 5]); hB = 1.0 - h65 @ h43.T
        geo = gh * (hA + hB).mean() / 2 + gv * (vA + vB + vC + vD).mean() / 4
    else:
        geo = jnp.float32(0.0)
    return loc, geo, loc + geo


if __name__ == "__main__":
    key = jax.random.PRNGKey(0)
    k1, k2, k3, k4 = jax.random.split(key, 4)
    B, C, H, W, K = 4, 7, 16, 16, 7

    heatmap = jax.random.normal(k1, (B, C, H, W), dtype=jnp.float32)
    target_hm = jax.random.normal(k2, (B, C, H, W), dtype=jnp.float32)
    points = jax.random.uniform(k3, (B, K, 2), dtype=jnp.float32)
    target_points = jax.random.uniform(k4, (B, K, 2), dtype=jnp.float32)

    configs = [
        dict(loss_type="l2_softargmax", include_geo=True),
        dict(loss_type="l1_softargmax", include_geo=True),
        dict(loss_type="l2_heatmap", include_geo=True),
        dict(loss_type="l2_heatmap", include_geo=False),
    ]

    for cfg in configs:
        loc, geo, total = cross_ratio_loss(
            heatmap, points, target_hm, target_points,
            loss_type=cfg["loss_type"], include_geo=cfg["include_geo"],
            geo_loss_gamma_horz=0.05, geo_loss_gamma_vert=0.05)
        jax.block_until_ready(total)

        r_loc, r_geo, r_tot = _reference(
            heatmap, points, target_hm, target_points,
            cfg["loss_type"], cfg["include_geo"], 0.05, 0.05)

        assert jnp.allclose(loc, r_loc, rtol=1e-4, atol=1e-4), (cfg, loc, r_loc)
        assert jnp.allclose(geo, r_geo, rtol=1e-4, atol=1e-4), (cfg, geo, r_geo)
        assert jnp.allclose(total, r_tot, rtol=1e-4, atol=1e-4), (cfg, total, r_tot)

    print("KERNEL_OK")
</pallas_src>

<mosaic_0001>
module attributes {stable_mosaic.version = 11 : i64} {
  func.func @_points_loss_kernel(%arg0: i32, %arg1: memref<4x14xf32, #tpu.memory_space<vmem>>, %arg2: memref<4x14xf32, #tpu.memory_space<vmem>>, %arg3: memref<1x2xf32, #tpu.memory_space<vmem>>) attributes {dimension_semantics = [#tpu.dimension_semantics<arbitrary>], iteration_bounds = array<i64: 1>, scalar_prefetch = 0 : i64, scratch_operands = 0 : i64, tpu.core_type = #tpu.core_type<tc>, window_params = [{pipeline_mode = #tpu.pipeline_mode<synchronous>, transform_indices = @transform_0, window_bounds = array<i64: 4, 14>}, {pipeline_mode = #tpu.pipeline_mode<synchronous>, transform_indices = @transform_1, window_bounds = array<i64: 4, 14>}, {pipeline_mode = #tpu.pipeline_mode<synchronous>, transform_indices = @transform_2, window_bounds = array<i64: 1, 2>}]} {
    %c0 = arith.constant 0 : index
    %c0_0 = arith.constant 0 : index
    %0 = vector.load %arg1[%c0, %c0_0] : memref<4x14xf32, #tpu.memory_space<vmem>>, vector<4x14xf32>
    %c0_1 = arith.constant 0 : index
    %c0_2 = arith.constant 0 : index
    %1 = vector.load %arg2[%c0_1, %c0_2] : memref<4x14xf32, #tpu.memory_space<vmem>>, vector<4x14xf32>
    %2 = arith.subf %0, %1 : vector<4x14xf32>
    %3 = arith.mulf %2, %2 : vector<4x14xf32>
    %4 = vector.shape_cast %3 : vector<4x14xf32> to vector<1x4x14xf32>
    %cst = arith.constant dense<0.000000e+00> : vector<1xf32>
    %5 = vector.multi_reduction <add>, %4, %cst [1, 2] : vector<1x4x14xf32> to vector<1xf32>
    %6 = vector.shape_cast %5 : vector<1xf32> to vector<1x1x1xf32>
    %7 = vector.extract %6[0, 0, 0] : f32 from vector<1x1x1xf32>
    %8 = vector.broadcast %7 : f32 to vector<1x1xf32>
    %cst_3 = arith.constant 2.500000e-01 : f32
    %9 = vector.broadcast %cst_3 : f32 to vector<1x1xf32>
    %10 = arith.mulf %8, %9 : vector<1x1xf32>
    %11 = vector.extract_strided_slice %0 {offsets = [0, 10], sizes = [4, 2], strides = [1, 1]} : vector<4x14xf32> to vector<4x2xf32>
    %12 = vector.extract_strided_slice %0 {offsets = [0, 6], sizes = [4, 2], strides = [1, 1]} : vector<4x14xf32> to vector<4x2xf32>
    %13 = arith.subf %11, %12 : vector<4x2xf32>
    %14 = arith.mulf %13, %13 : vector<4x2xf32>
    %cst_4 = arith.constant dense<0.000000e+00> : vector<4xf32>
    %15 = vector.multi_reduction <add>, %14, %cst_4 [1] : vector<4x2xf32> to vector<4xf32>
    %16 = vector.shape_cast %15 : vector<4xf32> to vector<4x1xf32>
    %cst_5 = arith.constant 1.000000e-24 : f32
    %17 = vector.broadcast %cst_5 : f32 to vector<4x1xf32>
    %18 = arith.maximumf %16, %17 : vector<4x1xf32>
    %19 = math.rsqrt %18 : vector<4x1xf32>
    %20 = vector.broadcast %19 : vector<4x1xf32> to vector<4x2xf32>
    %21 = arith.mulf %13, %20 : vector<4x2xf32>
    %22 = vector.extract_strided_slice %0 {offsets = [0, 6], sizes = [4, 2], strides = [1, 1]} : vector<4x14xf32> to vector<4x2xf32>
    %23 = vector.extract_strided_slice %0 {offsets = [0, 2], sizes = [4, 2], strides = [1, 1]} : vector<4x14xf32> to vector<4x2xf32>
    %24 = arith.subf %22, %23 : vector<4x2xf32>
    %25 = arith.mulf %24, %24 : vector<4x2xf32>
    %cst_6 = arith.constant dense<0.000000e+00> : vector<4xf32>
    %26 = vector.multi_reduction <add>, %25, %cst_6 [1] : vector<4x2xf32> to vector<4xf32>
    %27 = vector.shape_cast %26 : vector<4xf32> to vector<4x1xf32>
    %cst_7 = arith.constant 1.000000e-24 : f32
    %28 = vector.broadcast %cst_7 : f32 to vector<4x1xf32>
    %29 = arith.maximumf %27, %28 : vector<4x1xf32>
    %30 = math.rsqrt %29 : vector<4x1xf32>
    %31 = vector.broadcast %30 : vector<4x1xf32> to vector<4x2xf32>
    %32 = arith.mulf %24, %31 : vector<4x2xf32>
    %33 = vector.extract_strided_slice %0 {offsets = [0, 2], sizes = [4, 2], strides = [1, 1]} : vector<4x14xf32> to vector<4x2xf32>
    %34 = vector.extract_strided_slice %0 {offsets = [0, 0], sizes = [4, 2], strides = [1, 1]} : vector<4x14xf32> to vector<4x2xf32>
    %35 = arith.subf %33, %34 : vector<4x2xf32>
    %36 = arith.mulf %35, %35 : vector<4x2xf32>
    %cst_8 = arith.constant dense<0.000000e+00> : vector<4xf32>
    %37 = vector.multi_reduction <add>, %36, %cst_8 [1] : vector<4x2xf32> to vector<4xf32>
    %38 = vector.shape_cast %37 : vector<4xf32> to vector<4x1xf32>
    %cst_9 = arith.constant 1.000000e-24 : f32
    %39 = vector.broadcast %cst_9 : f32 to vector<4x1xf32>
    %40 = arith.maximumf %38, %39 : vector<4x1xf32>
    %41 = math.rsqrt %40 : vector<4x1xf32>
    %42 = vector.broadcast %41 : vector<4x1xf32> to vector<4x2xf32>
    %43 = arith.mulf %35, %42 : vector<4x2xf32>
    %44 = vector.extract_strided_slice %0 {offsets = [0, 12], sizes = [4, 2], strides = [1, 1]} : vector<4x14xf32> to vector<4x2xf32>
    %45 = vector.extract_strided_slice %0 {offsets = [0, 8], sizes = [4, 2], strides = [1, 1]} : vector<4x14xf32> to vector<4x2xf32>
    %46 = arith.subf %44, %45 : vector<4x2xf32>
    %47 = arith.mulf %46, %46 : vector<4x2xf32>
    %cst_10 = arith.constant dense<0.000000e+00> : vector<4xf32>
    %48 = vector.multi_reduction <add>, %47, %cst_10 [1] : vector<4x2xf32> to vector<4xf32>
    %49 = vector.shape_cast %48 : vector<4xf32> to vector<4x1xf32>
    %cst_11 = arith.constant 1.000000e-24 : f32
    %50 = vector.broadcast %cst_11 : f32 to vector<4x1xf32>
    %51 = arith.maximumf %49, %50 : vector<4x1xf32>
    %52 = math.rsqrt %51 : vector<4x1xf32>
    %53 = vector.broadcast %52 : vector<4x1xf32> to vector<4x2xf32>
    %54 = arith.mulf %46, %53 : vector<4x2xf32>
    %55 = vector.extract_strided_slice %0 {offsets = [0, 8], sizes = [4, 2], strides = [1, 1]} : vector<4x14xf32> to vector<4x2xf32>
    %56 = vector.extract_strided_slice %0 {offsets = [0, 4], sizes = [4, 2], strides = [1, 1]} : vector<4x14xf32> to vector<4x2xf32>
    %57 = arith.subf %55, %56 : vector<4x2xf32>
    %58 = arith.mulf %57, %57 : vector<4x2xf32>
    %cst_12 = arith.constant dense<0.000000e+00> : vector<4xf32>
    %59 = vector.multi_reduction <add>, %58, %cst_12 [1] : vector<4x2xf32> to vector<4xf32>
    %60 = vector.shape_cast %59 : vector<4xf32> to vector<4x1xf32>
    %cst_13 = arith.constant 1.000000e-24 : f32
    %61 = vector.broadcast %cst_13 : f32 to vector<4x1xf32>
    %62 = arith.maximumf %60, %61 : vector<4x1xf32>
    %63 = math.rsqrt %62 : vector<4x1xf32>
    %64 = vector.broadcast %63 : vector<4x1xf32> to vector<4x2xf32>
    %65 = arith.mulf %57, %64 : vector<4x2xf32>
    %66 = vector.extract_strided_slice %0 {offsets = [0, 4], sizes = [4, 2], strides = [1, 1]} : vector<4x14xf32> to vector<4x2xf32>
    %67 = vector.extract_strided_slice %0 {offsets = [0, 0], sizes = [4, 2], strides = [1, 1]} : vector<4x14xf32> to vector<4x2xf32>
    %68 = arith.subf %66, %67 : vector<4x2xf32>
    %69 = arith.mulf %68, %68 : vector<4x2xf32>
    %cst_14 = arith.constant dense<0.000000e+00> : vector<4xf32>
    %70 = vector.multi_reduction <add>, %69, %cst_14 [1] : vector<4x2xf32> to vector<4xf32>
    %71 = vector.shape_cast %70 : vector<4xf32> to vector<4x1xf32>
    %cst_15 = arith.constant 1.000000e-24 : f32
    %72 = vector.broadcast %cst_15 : f32 to vector<4x1xf32>
    %73 = arith.maximumf %71, %72 : vector<4x1xf32>
    %74 = math.rsqrt %73 : vector<4x1xf32>
    %75 = vector.broadcast %74 : vector<4x1xf32> to vector<4x2xf32>
    %76 = arith.mulf %68, %75 : vector<4x2xf32>
    %77 = vector.extract_strided_slice %0 {offsets = [0, 4], sizes = [4, 2], strides = [1, 1]} : vector<4x14xf32> to vector<4x2xf32>
    %78 = vector.extract_strided_slice %0 {offsets = [0, 2], sizes = [4, 2], strides = [1, 1]} : vector<4x14xf32> to vector<4x2xf32>
    %79 = arith.subf %77, %78 : vector<4x2xf32>
    %80 = arith.mulf %79, %79 : vector<4x2xf32>
    %cst_16 = arith.constant dense<0.000000e+00> : vector<4xf32>
    %81 = vector.multi_reduction <add>, %80, %cst_16 [1] : vector<4x2xf32> to vector<4xf32>
    %82 = vector.shape_cast %81 : vector<4xf32> to vector<4x1xf32>
    %cst_17 = arith.constant 1.000000e-24 : f32
    %83 = vector.broadcast %cst_17 : f32 to vector<4x1xf32>
    %84 = arith.maximumf %82, %83 : vector<4x1xf32>
    %85 = math.rsqrt %84 : vector<4x1xf32>
    %86 = vector.broadcast %85 : vector<4x1xf32> to vector<4x2xf32>
    %87 = arith.mulf %79, %86 : vector<4x2xf32>
    %88 = vector.extract_strided_slice %0 {offsets = [0, 8], sizes = [4, 2], strides = [1, 1]} : vector<4x14xf32> to vector<4x2xf32>
    %89 = vector.extract_strided_slice %0 {offsets = [0, 6], sizes = [4, 2], strides = [1, 1]} : vector<4x14xf32> to vector<4x2xf32>
    %90 = arith.subf %88, %89 : vector<4x2xf32>
    %91 = arith.mulf %90, %90 : vector<4x2xf32>
    %cst_18 = arith.constant dense<0.000000e+00> : vector<4xf32>
    %92 = vector.multi_reduction <add>, %91, %cst_18 [1] : vector<4x2xf32> to vector<4xf32>
    %93 = vector.shape_cast %92 : vector<4xf32> to vector<4x1xf32>
    %cst_19 = arith.constant 1.000000e-24 : f32
    %94 = vector.broadcast %cst_19 : f32 to vector<4x1xf32>
    %95 = arith.maximumf %93, %94 : vector<4x1xf32>
    %96 = math.rsqrt %95 : vector<4x1xf32>
    %97 = vector.broadcast %96 : vector<4x1xf32> to vector<4x2xf32>
    %98 = arith.mulf %90, %97 : vector<4x2xf32>
    %99 = vector.extract_strided_slice %0 {offsets = [0, 12], sizes = [4, 2], strides = [1, 1]} : vector<4x14xf32> to vector<4x2xf32>
    %100 = vector.extract_strided_slice %0 {offsets = [0, 10], sizes = [4, 2], strides = [1, 1]} : vector<4x14xf32> to vector<4x2xf32>
    %101 = arith.subf %99, %100 : vector<4x2xf32>
    %102 = arith.mulf %101, %101 : vector<4x2xf32>
    %cst_20 = arith.constant dense<0.000000e+00> : vector<4xf32>
    %103 = vector.multi_reduction <add>, %102, %cst_20 [1] : vector<4x2xf32> to vector<4xf32>
    %104 = vector.shape_cast %103 : vector<4xf32> to vector<4x1xf32>
    %cst_21 = arith.constant 1.000000e-24 : f32
    %105 = vector.broadcast %cst_21 : f32 to vector<4x1xf32>
    %106 = arith.maximumf %104, %105 : vector<4x1xf32>
    %107 = math.rsqrt %106 : vector<4x1xf32>
    %108 = vector.broadcast %107 : vector<4x1xf32> to vector<4x2xf32>
    %109 = arith.mulf %101, %108 : vector<4x2xf32>
    %cst_22 = arith.constant dense<0.000000e+00> : vector<2xf32>
    %110 = vector.multi_reduction <add>, %32, %cst_22 [0] : vector<4x2xf32> to vector<2xf32>
    %111 = vector.shape_cast %110 : vector<2xf32> to vector<1x2xf32>
    %cst_23 = arith.constant dense<0.000000e+00> : vector<2xf32>
    %112 = vector.multi_reduction <add>, %21, %cst_23 [0] : vector<4x2xf32> to vector<2xf32>
    %113 = vector.shape_cast %112 : vector<2xf32> to vector<1x2xf32>
    %114 = arith.mulf %111, %113 : vector<1x2xf32>
    %cst_24 = arith.constant dense<0.000000e+00> : vector<1xf32>
    %115 = vector.multi_reduction <add>, %114, %cst_24 [1] : vector<1x2xf32> to vector<1xf32>
    %116 = vector.shape_cast %115 : vector<1xf32> to vector<1x1xf32>
    %cst_25 = arith.constant 6.250000e-02 : f32
    %117 = vector.broadcast %cst_25 : f32 to vector<1x1xf32>
    %118 = arith.mulf %116, %117 : vector<1x1xf32>
    %cst_26 = arith.constant dense<0.000000e+00> : vector<2xf32>
    %119 = vector.multi_reduction <add>, %43, %cst_26 [0] : vector<4x2xf32> to vector<2xf32>
    %120 = vector.shape_cast %119 : vector<2xf32> to vector<1x2xf32>
    %cst_27 = arith.constant dense<0.000000e+00> : vector<2xf32>
    %121 = vector.multi_reduction <add>, %32, %cst_27 [0] : vector<4x2xf32> to vector<2xf32>
    %122 = vector.shape_cast %121 : vector<2xf32> to vector<1x2xf32>
    %123 = arith.mulf %120, %122 : vector<1x2xf32>
    %cst_28 = arith.constant dense<0.000000e+00> : vector<1xf32>
    %124 = vector.multi_reduction <add>, %123, %cst_28 [1] : vector<1x2xf32> to vector<1xf32>
    %125 = vector.shape_cast %124 : vector<1xf32> to vector<1x1xf32>
    %cst_29 = arith.constant 6.250000e-02 : f32
    %126 = vector.broadcast %cst_29 : f32 to vector<1x1xf32>
    %127 = arith.mulf %125, %126 : vector<1x1xf32>
    %128 = arith.addf %118, %127 : vector<1x1xf32>
    %cst_30 = arith.constant dense<0.000000e+00> : vector<2xf32>
    %129 = vector.multi_reduction <add>, %54, %cst_30 [0] : vector<4x2xf32> to vector<2xf32>
    %130 = vector.shape_cast %129 : vector<2xf32> to vector<1x2xf32>
    %cst_31 = arith.constant dense<0.000000e+00> : vector<2xf32>
    %131 = vector.multi_reduction <add>, %65, %cst_31 [0] : vector<4x2xf32> to vector<2xf32>
    %132 = vector.shape_cast %131 : vector<2xf32> to vector<1x2xf32>
    %133 = arith.mulf %130, %132 : vector<1x2xf32>
    %cst_32 = arith.constant dense<0.000000e+00> : vector<1xf32>
    %134 = vector.multi_reduction <add>, %133, %cst_32 [1] : vector<1x2xf32> to vector<1xf32>
    %135 = vector.shape_cast %134 : vector<1xf32> to vector<1x1xf32>
    %cst_33 = arith.constant 6.250000e-02 : f32
    %136 = vector.broadcast %cst_33 : f32 to vector<1x1xf32>
    %137 = arith.mulf %135, %136 : vector<1x1xf32>
    %138 = arith.addf %128, %137 : vector<1x1xf32>
    %cst_34 = arith.constant dense<0.000000e+00> : vector<2xf32>
    %139 = vector.multi_reduction <add>, %65, %cst_34 [0] : vector<4x2xf32> to vector<2xf32>
    %140 = vector.shape_cast %139 : vector<2xf32> to vector<1x2xf32>
    %cst_35 = arith.constant dense<0.000000e+00> : vector<2xf32>
    %141 = vector.multi_reduction <add>, %76, %cst_35 [0] : vector<4x2xf32> to vector<2xf32>
    %142 = vector.shape_cast %141 : vector<2xf32> to vector<1x2xf32>
    %143 = arith.mulf %140, %142 : vector<1x2xf32>
    %cst_36 = arith.constant dense<0.000000e+00> : vector<1xf32>
    %144 = vector.multi_reduction <add>, %143, %cst_36 [1] : vector<1x2xf32> to vector<1xf32>
    %145 = vector.shape_cast %144 : vector<1xf32> to vector<1x1xf32>
    %cst_37 = arith.constant 6.250000e-02 : f32
    %146 = vector.broadcast %cst_37 : f32 to vector<1x1xf32>
    %147 = arith.mulf %145, %146 : vector<1x1xf32>
    %148 = arith.addf %138, %147 : vector<1x1xf32>
    %cst_38 = arith.constant 4.000000e+00 : f32
    %149 = vector.broadcast %cst_38 : f32 to vector<1x1xf32>
    %150 = arith.subf %149, %148 : vector<1x1xf32>
    %cst_39 = arith.constant dense<0.000000e+00> : vector<2xf32>
    %151 = vector.multi_reduction <add>, %98, %cst_39 [0] : vector<4x2xf32> to vector<2xf32>
    %152 = vector.shape_cast %151 : vector<2xf32> to vector<1x2xf32>
    %cst_40 = arith.constant dense<0.000000e+00> : vector<2xf32>
    %153 = vector.multi_reduction <add>, %87, %cst_40 [0] : vector<4x2xf32> to vector<2xf32>
    %154 = vector.shape_cast %153 : vector<2xf32> to vector<1x2xf32>
    %155 = arith.mulf %152, %154 : vector<1x2xf32>
    %cst_41 = arith.constant dense<0.000000e+00> : vector<1xf32>
    %156 = vector.multi_reduction <add>, %155, %cst_41 [1] : vector<1x2xf32> to vector<1xf32>
    %157 = vector.shape_cast %156 : vector<1xf32> to vector<1x1xf32>
    %cst_42 = arith.constant 6.250000e-02 : f32
    %158 = vector.broadcast %cst_42 : f32 to vector<1x1xf32>
    %159 = arith.mulf %157, %158 : vector<1x1xf32>
    %cst_43 = arith.constant dense<0.000000e+00> : vector<2xf32>
    %160 = vector.multi_reduction <add>, %109, %cst_43 [0] : vector<4x2xf32> to vector<2xf32>
    %161 = vector.shape_cast %160 : vector<2xf32> to vector<1x2xf32>
    %cst_44 = arith.constant dense<0.000000e+00> : vector<2xf32>
    %162 = vector.multi_reduction <add>, %98, %cst_44 [0] : vector<4x2xf32> to vector<2xf32>
    %163 = vector.shape_cast %162 : vector<2xf32> to vector<1x2xf32>
    %164 = arith.mulf %161, %163 : vector<1x2xf32>
    %cst_45 = arith.constant dense<0.000000e+00> : vector<1xf32>
    %165 = vector.multi_reduction <add>, %164, %cst_45 [1] : vector<1x2xf32> to vector<1xf32>
    %166 = vector.shape_cast %165 : vector<1xf32> to vector<1x1xf32>
    %cst_46 = arith.constant 6.250000e-02 : f32
    %167 = vector.broadcast %cst_46 : f32 to vector<1x1xf32>
    %168 = arith.mulf %166, %167 : vector<1x1xf32>
    %169 = arith.addf %159, %168 : vector<1x1xf32>
    %cst_47 = arith.constant 2.000000e+00 : f32
    %170 = vector.broadcast %cst_47 : f32 to vector<1x1xf32>
    %171 = arith.subf %170, %169 : vector<1x1xf32>
    %cst_48 = arith.constant 5.000000e-02 : f32
    %172 = vector.broadcast %cst_48 : f32 to vector<1x1xf32>
    %173 = arith.mulf %172, %171 : vector<1x1xf32>
    %cst_49 = arith.constant 2.000000e+00 : f32
    %174 = vector.broadcast %cst_49 : f32 to vector<1x1xf32>
    %175 = arith.divf %173, %174 : vector<1x1xf32>
    %cst_50 = arith.constant 5.000000e-02 : f32
    %176 = vector.broadcast %cst_50 : f32 to vector<1x1xf32>
    %177 = arith.mulf %176, %150 : vector<1x1xf32>
    %cst_51 = arith.constant 4.000000e+00 : f32
    %178 = vector.broadcast %cst_51 : f32 to vector<1x1xf32>
    %179 = arith.divf %177, %178 : vector<1x1xf32>
    %180 = arith.addf %175, %179 : vector<1x1xf32>
    %181 = tpu.iota {dimensions = array<i32: 1>} : vector<1x2xi32>
    %c0_i32 = arith.constant 0 : i32
    %182 = vector.broadcast %c0_i32 : i32 to vector<1x2xi32>
    %183 = arith.cmpi eq, %181, %182 : vector<1x2xi32>
    %184 = vector.shape_cast %10 : vector<1x1xf32> to vector<1x1xf32>
    %185 = vector.broadcast %184 : vector<1x1xf32> to vector<1x2xf32>
    %186 = vector.shape_cast %180 : vector<1x1xf32> to vector<1x1xf32>
    %187 = vector.broadcast %186 : vector<1x1xf32> to vector<1x2xf32>
    %188 = arith.select %183, %185, %187 : vector<1x2xi1>, vector<1x2xf32>
    %c0_52 = arith.constant 0 : index
    %c0_53 = arith.constant 0 : index
    %189 = vector.load %arg3[%c0_52, %c0_53] : memref<1x2xf32, #tpu.memory_space<vmem>>, vector<1x2xf32>
    tpu.vector_store %arg3[%c0_52, %c0_53], %188 {strides = array<i32>} : memref<1x2xf32, #tpu.memory_space<vmem>>, vector<1x2xf32>,
    return
  }
  func.func @transform_0(%arg0: i32) -> (i32, i32) {
    %c0_i32 = arith.constant 0 : i32
    %c0_i32_0 = arith.constant 0 : i32
    %c0_i32_1 = arith.constant 0 : i32
    return %c0_i32, %c0_i32_0 : i32, i32
  }
  func.func @transform_1(%arg0: i32) -> (i32, i32) {
    %c0_i32 = arith.constant 0 : i32
    %c0_i32_0 = arith.constant 0 : i32
    %c0_i32_1 = arith.constant 0 : i32
    return %c0_i32, %c0_i32_0 : i32, i32
  }
  func.func @transform_2(%arg0: i32) -> (i32, i32) {
    %c0_i32 = arith.constant 0 : i32
    %c0_i32_0 = arith.constant 0 : i32
    %c0_i32_1 = arith.constant 0 : i32
    return %c0_i32, %c0_i32_0 : i32, i32
  }
}

</mosaic_0001>

<llo_original>
// kernel: tpu_custom_call.1
$region0: #{tpu_custom_call.1}
  #allocation0 [shape = 'u32[]', space=smem, size = 0x4, offset = 0x4, fixed_abs, tag = 'smem constant byte address 0x4 - core index']
  #allocation1 [shape = 'u32[72,128]{1,0:T(1,128)}', space=vmem, size = 0x9000, scoped, tag = 'internal scratch']
  %s0 = inlined_call_operand.hbm [shape: f32[4,14], index: 0, kind: input, shape index: {}]
  %s1 = inlined_call_operand.hbm [shape: f32[4,14], index: 1, kind: input, shape index: {}]
  %s2 = inlined_call_operand.hbm [shape: f32[1,2], index: 2, kind: output, shape index: {}]
  %s3 = sld [smem:[#allocation0]]
  $region26: #{tpu_custom_call.1} parent=0
    _
  %s5 = ssub.s32 1, %s3
  %s6 = scalar_select 0, %s5, %s3
  $region1: #{tpu_custom_call.1} parent=0
    #allocation2 [shape = 'u8[2048]{0}', space=vmem, size = 0x800, scoped, tag = 'input window, operand 0, single buffered']
    #allocation3 [shape = 's32[1]{0}', space=sflag, size = 0x4, scoped, tag = 'scoped memory for tpu_custom_call.1']
    #allocation4 [shape = 's32[1]{0}', space=sflag, size = 0x4, scoped, tag = 'scoped memory for tpu_custom_call.1']
    #allocation5 [shape = 'u8[2048]{0}', space=vmem, size = 0x800, scoped, tag = 'input window, operand 1, single buffered']
    #allocation6 [shape = 's32[1]{0}', space=sflag, size = 0x4, scoped, tag = 'scoped memory for tpu_custom_call.1']
    #allocation7 [shape = 'u8[512]{0}', space=vmem, size = 0x400, scoped, tag = 'output window, operand 0, single buffered']
    %7 = vsyncpa [#allocation3], 0
    %8 = vsyncpa [#allocation6], 0
    %9 = vsyncpa [#allocation4], 0
    // Predicated region
    $region2: #{tpu_custom_call.1} parent=1 // pred_check
      _
    $region3: #{tpu_custom_call.1} parent=1 // pred_check_branch
      %11 = sbr.rel (0) target = $region5
    $region4: #{tpu_custom_call.1} parent=1 // pred_region
      %13 = vsyncadd [#allocation3], 0
      %s15 = sshll.u32 %s0, 4
      %s16 = int_to_ptr.hbm [resolvable:$true] %s15
      %s17 = sshll.u32 [#allocation2], 4
      %s18 = int_to_ptr.vmem [resolvable:$true] %s17
      %20 = dma.hbm_to_vmem [thread:$0]  %s16, 64, %s18, [#allocation3]
    $region5: #{tpu_custom_call.1} parent=1 // pred_fallthru
      _
    // Predicated region
    $region6: #{tpu_custom_call.1} parent=1 // pred_check
      _
    $region7: #{tpu_custom_call.1} parent=1 // pred_check_branch
      %22 = sbr.rel (0) target = $region9
    $region8: #{tpu_custom_call.1} parent=1 // pred_region
      %24 = vsyncadd [#allocation6], 0
      %s26 = sshll.u32 %s1, 4
      %s27 = int_to_ptr.hbm [resolvable:$true] %s26
      %s28 = sshll.u32 [#allocation5], 4
      %s29 = int_to_ptr.vmem [resolvable:$true] %s28
      %31 = dma.hbm_to_vmem [thread:$0]  %s27, 64, %s29, [#allocation6]
    $region9: #{tpu_custom_call.1} parent=1 // pred_fallthru
      _
    // Predicated region
    $region10: #{tpu_custom_call.1} parent=1 // pred_check
      _
    $region11: #{tpu_custom_call.1} parent=1 // pred_check_branch
      %33 = sbr.rel (0) target = $region13
    $region12: #{tpu_custom_call.1} parent=1 // pred_region
      %35 = dma.done [#allocation3], 64
    $region13: #{tpu_custom_call.1} parent=1 // pred_fallthru
      _
    // Predicated region
    $region14: #{tpu_custom_call.1} parent=1 // pred_check
      _
    $region15: #{tpu_custom_call.1} parent=1 // pred_check_branch
      %37 = sbr.rel (0) target = $region17
    $region16: #{tpu_custom_call.1} parent=1 // pred_region
      %39 = dma.done [#allocation6], 64
    $region17: #{tpu_custom_call.1} parent=1 // pred_fallthru
      _
    %v40 = vld [vmem:[#allocation2] sm:$0xf]
    %v41 = vld [vmem:[#allocation5] sm:$0xf]
    %v42 = vsub.f32 %v40, %v41
    %v43 = vmul.f32 %v42, %v42
    %vm44 = vcmask 109568
    %v45 = vsel %vm44, %v43, 0.0
    %46 = vadd.xlane.f32.xlu0 %v45
    %v47 = vpop.xlane.xlu0 %46
    %v48 = vrot.slane %v47, 4
    %v49 = vadd.f32 %v47, %v48
    %v50 = vrot.slane %v49, 2
    %v51 = vadd.f32 %v49, %v50
    %v52 = vrot.slane %v51, 1
    %v53 = vadd.f32 %v51, %v52
    %s54 = vtos %v53
    %v55 = vstv %s54
    %v56 = vmul.f32 %v55, 0.25
    %58 = vrot.lane.b32.xlu0 %v40, 4
    %v59 = vpop.permute.xlu0 %58
    %v61 = vsub.f32 %v40, %v59
    %v62 = vmul.f32 %v61, %v61
    %64 = vrot.lane.b32.xlu0 %v62, 118
    %v65 = vpop.permute.xlu0 %64
    %vm67 = vcmask 11264
    %v68 = vsel %vm67, %v65, 0.0
    %69 = vadd.xlane.f32.xlu0 %v68
    %v70 = vpop.xlane.xlu0 %69
    %v71 = vmax.f32 %v70, 1e-24
    %v72 = vrsqrt.pop %v71
    %v73 = vmul.f32 %v72, %v71
    %v74 = vmul.f32 %v73, %v72
    %v75 = vmul.f32 0.5, %v74
    %v76 = vsub.f32 1.5, %v75
    %v77 = vmul.f32 %v72, %v76
    %vm78 = vweird.f32 %v71
    %vm79 = vweird.f32 %v72
    %vm80 = vmor %vm78, %vm79
    %v81 = vsel %vm80, %v72, %v77
    %v82 = vmul.f32 %v61, %v81
    %83 = vrot.lane.b32.xlu0 %v62, 122
    %v84 = vpop.permute.xlu0 %83
    %v86 = vsel %vm67, %v84, 0.0
    %87 = vadd.xlane.f32.xlu0 %v86
    %v88 = vpop.xlane.xlu0 %87
    %v89 = vmax.f32 %v88, 1e-24
    %v90 = vrsqrt.pop %v89
    %v91 = vmul.f32 %v90, %v89
    %v92 = vmul.f32 %v91, %v90
    %v93 = vmul.f32 0.5, %v92
    %v94 = vsub.f32 1.5, %v93
    %v95 = vmul.f32 %v90, %v94
    %vm96 = vweird.f32 %v89
    %vm97 = vweird.f32 %v90
    %vm98 = vmor %vm96, %vm97
    %v99 = vsel %vm98, %v90, %v95
    %v100 = vmul.f32 %v61, %v99
    %101 = vrot.lane.b32.xlu0 %v40, 2
    %v102 = vpop.permute.xlu0 %101
    %v104 = vsub.f32 %v40, %v102
    %v105 = vmul.f32 %v104, %v104
    %107 = vrot.lane.b32.xlu0 %v105, 126
    %v108 = vpop.permute.xlu0 %107
    %v110 = vsel %vm67, %v108, 0.0
    %111 = vadd.xlane.f32.xlu0 %v110
    %v112 = vpop.xlane.xlu0 %111
    %v113 = vmax.f32 %v112, 1e-24
    %v114 = vrsqrt.pop %v113
    %v115 = vmul.f32 %v114, %v113
    %v116 = vmul.f32 %v115, %v114
    %v117 = vmul.f32 0.5, %v116
    %v118 = vsub.f32 1.5, %v117
    %v119 = vmul.f32 %v114, %v118
    %vm120 = vweird.f32 %v113
    %vm121 = vweird.f32 %v114
    %vm122 = vmor %vm120, %vm121
    %v123 = vsel %vm122, %v114, %v119
    %v124 = vmul.f32 %v104, %v123
    %125 = vrot.lane.b32.xlu0 %v62, 116
    %v126 = vpop.permute.xlu0 %125
    %v128 = vsel %vm67, %v126, 0.0
    %129 = vadd.xlane.f32.xlu0 %v128
    %v130 = vpop.xlane.xlu0 %129
    %v131 = vmax.f32 %v130, 1e-24
    %v132 = vrsqrt.pop %v131
    %v133 = vmul.f32 %v132, %v131
    %v134 = vmul.f32 %v133, %v132
    %v135 = vmul.f32 0.5, %v134
    %v136 = vsub.f32 1.5, %v135
    %v137 = vmul.f32 %v132, %v136
    %vm138 = vweird.f32 %v131
    %vm139 = vweird.f32 %v132
    %vm140 = vmor %vm138, %vm139
    %v141 = vsel %vm140, %v132, %v137
    %v142 = vmul.f32 %v61, %v141
    %143 = vrot.lane.b32.xlu0 %v62, 120
    %v144 = vpop.permute.xlu0 %143
    %v146 = vsel %vm67, %v144, 0.0
    %147 = vadd.xlane.f32.xlu0 %v146
    %v148 = vpop.xlane.xlu0 %147
    %v149 = vmax.f32 %v148, 1e-24
    %v150 = vrsqrt.pop %v149
    %v151 = vmul.f32 %v150, %v149
    %v152 = vmul.f32 %v151, %v150
    %v153 = vmul.f32 0.5, %v152
    %v154 = vsub.f32 1.5, %v153
    %v155 = vmul.f32 %v150, %v154
    %vm156 = vweird.f32 %v149
    %vm157 = vweird.f32 %v150
    %vm158 = vmor %vm156, %vm157
    %v159 = vsel %vm158, %v150, %v155
    %v160 = vmul.f32 %v61, %v159
    %161 = vrot.lane.b32.xlu0 %v62, 124
    %v162 = vpop.permute.xlu0 %161
    %v164 = vsel %vm67, %v162, 0.0
    %165 = vadd.xlane.f32.xlu0 %v164
    %v166 = vpop.xlane.xlu0 %165
    %v167 = vmax.f32 %v166, 1e-24
    %v168 = vrsqrt.pop %v167
    %v169 = vmul.f32 %v168, %v167
    %v170 = vmul.f32 %v169, %v168
    %v171 = vmul.f32 0.5, %v170
    %v172 = vsub.f32 1.5, %v171
    %v173 = vmul.f32 %v168, %v172
    %vm174 = vweird.f32 %v167
    %vm175 = vweird.f32 %v168
    %vm176 = vmor %vm174, %vm175
    %v177 = vsel %vm176, %v168, %v173
    %v178 = vmul.f32 %v61, %v177
    %179 = vrot.lane.b32.xlu0 %v105, 124
    %v180 = vpop.permute.xlu0 %179
    %v182 = vsel %vm67, %v180, 0.0
    %183 = vadd.xlane.f32.xlu0 %v182
    %v184 = vpop.xlane.xlu0 %183
    %v185 = vmax.f32 %v184, 1e-24
    %v186 = vrsqrt.pop %v185
    %v187 = vmul.f32 %v186, %v185
    %v188 = vmul.f32 %v187, %v186
    %v189 = vmul.f32 0.5, %v188
    %v190 = vsub.f32 1.5, %v189
    %v191 = vmul.f32 %v186, %v190
    %vm192 = vweird.f32 %v185
    %vm193 = vweird.f32 %v186
    %vm194 = vmor %vm192, %vm193
    %v195 = vsel %vm194, %v186, %v191
    %v196 = vmul.f32 %v104, %v195
    %197 = vrot.lane.b32.xlu0 %v105, 120
    %v198 = vpop.permute.xlu0 %197
    %v200 = vsel %vm67, %v198, 0.0
    %201 = vadd.xlane.f32.xlu0 %v200
    %v202 = vpop.xlane.xlu0 %201
    %v203 = vmax.f32 %v202, 1e-24
    %v204 = vrsqrt.pop %v203
    %v205 = vmul.f32 %v204, %v203
    %v206 = vmul.f32 %v205, %v204
    %v207 = vmul.f32 0.5, %v206
    %v208 = vsub.f32 1.5, %v207
    %v209 = vmul.f32 %v204, %v208
    %vm210 = vweird.f32 %v203
    %vm211 = vweird.f32 %v204
    %vm212 = vmor %vm210, %vm211
    %v213 = vsel %vm212, %v204, %v209
    %v214 = vmul.f32 %v104, %v213
    %215 = vrot.lane.b32.xlu0 %v105, 116
    %v216 = vpop.permute.xlu0 %215
    %v218 = vsel %vm67, %v216, 0.0
    %219 = vadd.xlane.f32.xlu0 %v218
    %v220 = vpop.xlane.xlu0 %219
    %v221 = vmax.f32 %v220, 1e-24
    %v222 = vrsqrt.pop %v221
    %v223 = vmul.f32 %v222, %v221
    %v224 = vmul.f32 %v223, %v222
    %v225 = vmul.f32 0.5, %v224
    %v226 = vsub.f32 1.5, %v225
    %v227 = vmul.f32 %v222, %v226
    %vm228 = vweird.f32 %v221
    %vm229 = vweird.f32 %v222
    %vm230 = vmor %vm228, %vm229
    %v231 = vsel %vm230, %v222, %v227
    %v232 = vmul.f32 %v104, %v231
    %vm233 = vcmask 60464
    %v234 = vsel %vm233, %v100, 0.0
    %v235 = vrot.slane %v234, 4
    %v236 = vadd.f32 %v234, %v235
    %v237 = vrot.slane %v236, 2
    %v238 = vadd.f32 %v236, %v237
    %v239 = vrot.slane %v238, 1
    %v240 = vadd.f32 %v238, %v239
    %vm241 = vcmask 93264
    %v242 = vsel %vm241, %v82, 0.0
    %v243 = vrot.slane %v242, 4
    %v244 = vadd.f32 %v242, %v243
    %v245 = vrot.slane %v244, 2
    %v246 = vadd.f32 %v244, %v245
    %v247 = vrot.slane %v246, 1
    %v248 = vadd.f32 %v246, %v247
    %250 = vrot.lane.b32.xlu0 %v248, 124
    %v251 = vpop.permute.xlu0 %250
    %v253 = vmul.f32 %v240, %v251
    %255 = vrot.lane.b32.xlu0 %v253, 122
    %v256 = vpop.permute.xlu0 %255
    %vm258 = vcmask 8192
    %v259 = vsel %vm258, %v256, 0.0
    %260 = vadd.xlane.f32.xlu0 %v259
    %v261 = vpop.xlane.xlu0 %260
    %v262 = vmul.f32 %v261, 0.0625
    %vm263 = vcmask 27664
    %v264 = vsel %vm263, %v124, 0.0
    %v265 = vrot.slane %v264, 4
    %v266 = vadd.f32 %v264, %v265
    %v267 = vrot.slane %v266, 2
    %v268 = vadd.f32 %v266, %v267
    %v269 = vrot.slane %v268, 1
    %v270 = vadd.f32 %v268, %v269
    %272 = vrot.lane.b32.xlu0 %v240, 124
    %v273 = vpop.permute.xlu0 %272
    %v275 = vmul.f32 %v270, %v273
    %277 = vrot.lane.b32.xlu0 %v275, 126
    %v278 = vpop.permute.xlu0 %277
    %v280 = vsel %vm258, %v278, 0.0
    %281 = vadd.xlane.f32.xlu0 %v280
    %v282 = vpop.xlane.xlu0 %281
    %v283 = vmul.f32 %v282, 0.0625
    %v284 = vadd.f32 %v262, %v283
    %vm285 = vcmask 109664
    %v286 = vsel %vm285, %v142, 0.0
    %v287 = vrot.slane %v286, 4
    %v288 = vadd.f32 %v286, %v287
    %v289 = vrot.slane %v288, 2
    %v290 = vadd.f32 %v288, %v289
    %v291 = vrot.slane %v290, 1
    %v292 = vadd.f32 %v290, %v291
    %vm293 = vcmask 76864
    %v294 = vsel %vm293, %v160, 0.0
    %v295 = vrot.slane %v294, 4
    %v296 = vadd.f32 %v294, %v295
    %v297 = vrot.slane %v296, 2
    %v298 = vadd.f32 %v296, %v297
    %v299 = vrot.slane %v298, 1
    %v300 = vadd.f32 %v298, %v299
    %302 = vrot.lane.b32.xlu0 %v300, 4
    %v303 = vpop.permute.xlu0 %302
    %v305 = vmul.f32 %v292, %v303
    %307 = vrot.lane.b32.xlu0 %v305, 116
    %v308 = vpop.permute.xlu0 %307
    %v310 = vsel %vm258, %v308, 0.0
    %311 = vadd.xlane.f32.xlu0 %v310
    %v312 = vpop.xlane.xlu0 %311
    %v313 = vmul.f32 %v312, 0.0625
    %v314 = vadd.f32 %v284, %v313
    %vm315 = vcmask 44064
    %v316 = vsel %vm315, %v178, 0.0
    %v317 = vrot.slane %v316, 4
    %v318 = vadd.f32 %v316, %v317
    %v319 = vrot.slane %v318, 2
    %v320 = vadd.f32 %v318, %v319
    %v321 = vrot.slane %v320, 1
    %v322 = vadd.f32 %v320, %v321
    %324 = vrot.lane.b32.xlu0 %v322, 4
    %v325 = vpop.permute.xlu0 %324
    %v327 = vmul.f32 %v300, %v325
    %329 = vrot.lane.b32.xlu0 %v327, 120
    %v330 = vpop.permute.xlu0 %329
    %v332 = vsel %vm258, %v330, 0.0
    %333 = vadd.xlane.f32.xlu0 %v332
    %v334 = vpop.xlane.xlu0 %333
    %v335 = vmul.f32 %v334, 0.0625
    %v336 = vadd.f32 %v314, %v335
    %v337 = vsub.f32 4.0, %v336
    %v338 = vsel %vm293, %v214, 0.0
    %v339 = vrot.slane %v338, 4
    %v340 = vadd.f32 %v338, %v339
    %v341 = vrot.slane %v340, 2
    %v342 = vadd.f32 %v340, %v341
    %v343 = vrot.slane %v342, 1
    %v344 = vadd.f32 %v342, %v343
    %v345 = vsel %vm315, %v196, 0.0
    %v346 = vrot.slane %v345, 4
    %v347 = vadd.f32 %v345, %v346
    %v348 = vrot.slane %v347, 2
    %v349 = vadd.f32 %v347, %v348
    %v350 = vrot.slane %v349, 1
    %v351 = vadd.f32 %v349, %v350
    %353 = vrot.lane.b32.xlu0 %v351, 4
    %v354 = vpop.permute.xlu0 %353
    %v356 = vmul.f32 %v344, %v354
    %358 = vrot.lane.b32.xlu0 %v356, 120
    %v359 = vpop.permute.xlu0 %358
    %v361 = vsel %vm258, %v359, 0.0
    %362 = vadd.xlane.f32.xlu0 %v361
    %v363 = vpop.xlane.xlu0 %362
    %v364 = vmul.f32 %v363, 0.0625
    %v365 = vsel %vm285, %v232, 0.0
    %v366 = vrot.slane %v365, 4
    %v367 = vadd.f32 %v365, %v366
    %v368 = vrot.slane %v367, 2
    %v369 = vadd.f32 %v367, %v368
    %v370 = vrot.slane %v369, 1
    %v371 = vadd.f32 %v369, %v370
    %373 = vrot.lane.b32.xlu0 %v344, 4
    %v374 = vpop.permute.xlu0 %373
    %v376 = vmul.f32 %v371, %v374
    %378 = vrot.lane.b32.xlu0 %v376, 116
    %v379 = vpop.permute.xlu0 %378
    %v381 = vsel %vm258, %v379, 0.0
    %382 = vadd.xlane.f32.xlu0 %v381
    %v383 = vpop.xlane.xlu0 %382
    %v384 = vmul.f32 %v383, 0.0625
    %v385 = vadd.f32 %v364, %v384
    %v386 = vsub.f32 2.0, %v385
    %v387 = vmul.f32 %v386, 0.05
    %v388 = vrcp.pop 2.0
    %v389 = vmul.f32 2.0, %v388
    %v390 = vsub.f32 1.0, %v389
    %v391 = vmul.f32 %v388, %v390
    %v392 = vadd.f32 %v388, %v391
    %vm393 = vweird.f32 %v388
    %v394 = vsel %vm393, %v388, %v392
    %v395 = vmul.f32 %v387, %v394
    %v396 = vmul.f32 %v337, 0.05
    %v397 = vrcp.pop 4.0
    %v398 = vmul.f32 4.0, %v397
    %v399 = vsub.f32 1.0, %v398
    %v400 = vmul.f32 %v397, %v399
    %v401 = vadd.f32 %v397, %v400
    %vm402 = vweird.f32 %v397
    %v403 = vsel %vm402, %v397, %v401
    %v404 = vmul.f32 %v396, %v403
    %v405 = vadd.f32 %v395, %v404
    %v406 = vlaneseq
    %v407 = vand.u32 %v406, 127
    %vm408 = vcmp.eq.s32.totalorder %v407, 0
    %v409 = vsel %vm408, %v56, %v405
    %410 = vst.msk [vmem:[#allocation7] sm:$0x1] %vm258, %v409
    // Predicated region
    $region18: #{tpu_custom_call.1} parent=1 // pred_check
      _
    $region19: #{tpu_custom_call.1} parent=1 // pred_check_branch
      %412 = sbr.rel (0) target = $region21
    $region20: #{tpu_custom_call.1} parent=1 // pred_region
      %414 = vsyncadd [#allocation4], 0
      %s416 = sshll.u32 [#allocation7], 4
      %s417 = int_to_ptr.vmem [resolvable:$true] %s416
      %s418 = sshll.u32 %s2, 4
      %s419 = int_to_ptr.hbm [resolvable:$true] %s418
      %421 = dma.vmem_to_hbm [thread:$0]  %s417, 16, %s419, [#allocation4]
    $region21: #{tpu_custom_call.1} parent=1 // pred_fallthru
      _
    // Predicated region
    $region22: #{tpu_custom_call.1} parent=1 // pred_check
      _
    $region23: #{tpu_custom_call.1} parent=1 // pred_check_branch
      %423 = sbr.rel (0) target = $region25
    $region24: #{tpu_custom_call.1} parent=1 // pred_region
      %425 = dma.done [#allocation4], 16
    $region25: #{tpu_custom_call.1} parent=1 // pred_fallthru
      _
    %426 = vsyncpa [#allocation3], 1
    %427 = vsyncpa [#allocation6], 1
    %428 = vsyncpa [#allocation4], 1

</llo_original>
